<compile_context>
chip_gen: v6e
topology: v6e:2x2x1
jax: 0.10.0
libtpu: 0.0.40
codegen_flags: <defaults>
</compile_context>

<pallas_src>
import functools

import jax
import jax.numpy as jnp
from jax.experimental import pallas as pl
from jax.experimental.pallas import tpu as pltpu


def visualizer_kernel(x_ref, w_bb_ref, w_comb_ref, b_ref, o_ref):
    """Fused: backbone Linear+ReLU -> (vis_fc o fc) folded matmul (+bias).

    x_ref:      (B, D_in)        bf16 flattened input
    w_bb_ref:   (D_in, F_pad)    bf16 backbone Linear weight (transposed, lane-padded)
    w_comb_ref: (F_pad, N_pad)   f32  folded vis_fc @ fc weight, lane-padded
    b_ref:      (1, N_pad)       f32  fc bias, lane-padded
    o_ref:      (B, N_pad)       f32  lane-dense output (sliced in wrapper)
    """
    # backbone extract_features: Linear + ReLU (bf16 operands, f32 accumulate)
    h = jnp.dot(x_ref[...], w_bb_ref[...], preferred_element_type=jnp.float32)
    h = jnp.maximum(h, 0.0)
    # folded vis_fc+fc projection (+ bias), single MXU pass, lane-dense store
    o = jnp.dot(h, w_comb_ref[...], preferred_element_type=jnp.float32) + b_ref[...]
    o_ref[...] = o.astype(o_ref.dtype)


@jax.jit
def visualizer_forward(x_nchw, w_backbone, w_vis, w_fc, b_fc):
    """x_nchw: (B, C, H, W) float32.  Returns (B, num_classes) float32."""
    B = x_nchw.shape[0]
    x_flat = x_nchw.reshape(B, -1)                 # (B, C*H*W), NCHW flatten order
    d_in, f_dim = w_backbone.shape
    _, num_classes = w_fc.shape

    # --- trace-time weight folding: vis_fc then fc is one linear map after ReLU
    w_combined = w_vis.astype(jnp.float32) @ w_fc.astype(jnp.float32)  # (f_dim, num_classes)

    # --- lane-dense padding of hidden and output dims (unmasked vst, aligned MXU tiles)
    f_pad = max(128, pl.cdiv(f_dim, 128) * 128)
    n_pad = max(128, pl.cdiv(num_classes, 128) * 128)

    w_bb_p = jnp.zeros((d_in, f_pad), jnp.bfloat16).at[:, :f_dim].set(
        w_backbone.astype(jnp.bfloat16))
    w_comb_p = jnp.zeros((f_pad, n_pad), jnp.float32).at[:f_dim, :num_classes].set(
        w_combined)
    b_p = jnp.zeros((1, n_pad), jnp.float32).at[:, :num_classes].set(
        b_fc.astype(jnp.float32))

    # --- bf16 for the dominant matmul operand (f32 accumulation in-kernel)
    x_bf = x_flat.astype(jnp.bfloat16)

    bytes_accessed = (x_bf.size * 2 + w_bb_p.size * 2 +
                      w_comb_p.size * 4 + b_p.size * 4 + B * n_pad * 4)
    cost = pl.CostEstimate(
        flops=2 * B * d_in * f_pad + 2 * B * f_pad * n_pad,
        transcendentals=0,
        bytes_accessed=bytes_accessed)

    out_padded = pl.pallas_call(
        visualizer_kernel,
        out_shape=jax.ShapeDtypeStruct((B, n_pad), jnp.float32),
        # No grid: every array is a single full-extent block resident in VMEM
        # (all operands total well under 1 MiB even double-buffered).
        in_specs=[
            pl.BlockSpec((B, d_in), lambda: (0, 0)),
            pl.BlockSpec((d_in, f_pad), lambda: (0, 0)),
            pl.BlockSpec((f_pad, n_pad), lambda: (0, 0)),
            pl.BlockSpec((1, n_pad), lambda: (0, 0)),
        ],
        out_specs=pl.BlockSpec((B, n_pad), lambda: (0, 0)),
        compiler_params=pltpu.CompilerParams(vmem_limit_bytes=8 << 20),
        cost_estimate=cost,
    )(x_bf, w_bb_p, w_comb_p, b_p)

    return out_padded[:, :num_classes]


if __name__ == "__main__":
    # Small shapes consistent with the module.
    B, C, H, W = 2, 4, 16, 16
    D_IN = C * H * W           # flattened backbone input dim
    FEATURES_DIM = 32          # output_layer.in_features
    FEATURES = 3               # Visualizer "features" (visualizable dims)
    NUM_CLASSES = 10           # output_layer.out_features

    key = jax.random.PRNGKey(0)
    k_x, k_bb, k_out_w, k_out_b, k_fc_w = jax.random.split(key, 5)

    # Input (NCHW, like the PyTorch module would receive).
    x = jax.random.normal(k_x, (B, C, H, W), dtype=jnp.float32)

    # Synthetic backbone: Linear(D_IN, FEATURES_DIM) followed by ReLU.
    # Stored already transposed to (in, out) for the kernel.
    # TODO(synk): a real wrapped model's extract_features (conv backbone etc.)
    # is outside the scope of this kernel; only the Visualizer head + a
    # synthetic Linear+ReLU backbone are fused here.
    w_backbone = jax.random.normal(k_bb, (D_IN, FEATURES_DIM), dtype=jnp.float32) * 0.02

    # output_layer = nn.Linear(FEATURES_DIM, NUM_CLASSES): weight (out, in), bias (out,)
    out_layer_w = jax.random.normal(k_out_w, (NUM_CLASSES, FEATURES_DIM), dtype=jnp.float32) * 0.1
    out_layer_b = jax.random.normal(k_out_b, (NUM_CLASSES,), dtype=jnp.float32) * 0.1

    # fc = nn.Linear(FEATURES, NUM_CLASSES): synthetic init; bias copied from output_layer.
    fc_w = jax.random.normal(k_fc_w, (NUM_CLASSES, FEATURES), dtype=jnp.float32) * 0.5
    fc_b = out_layer_b

    # vis_fc.weight = torch.linalg.lstsq(fc.weight, output_layer.weight)[0]
    # (solves fc_w @ X = out_layer_w; same argument order as the module).
    vis_fc_w = jnp.linalg.lstsq(fc_w, out_layer_w)[0]     # (FEATURES, FEATURES_DIM)

    # Kernel-layout weights: (in_features, out_features)
    w_vis = vis_fc_w.T          # (FEATURES_DIM, FEATURES)
    w_fc = fc_w.T               # (FEATURES, NUM_CLASSES)

    out = visualizer_forward(x, w_backbone, w_vis, w_fc, fc_b)
    out = jax.block_until_ready(out)

    # Plain-JAX reference, mirroring the kernel's bf16 input cast for the
    # backbone matmul (f32 accumulation), then the unfolded two-step head
    # (vis_fc followed by fc), matching the module's forward structure.
    x_cast = x.reshape(B, -1).astype(jnp.bfloat16).astype(jnp.float32)
    w_bb_cast = w_backbone.astype(jnp.bfloat16).astype(jnp.float32)
    feats_ref = jnp.maximum(
        jnp.dot(x_cast, w_bb_cast, precision=jax.lax.Precision.HIGHEST), 0.0)
    vis_ref = jnp.dot(feats_ref, w_vis, precision=jax.lax.Precision.HIGHEST)
    ref = jnp.dot(vis_ref, w_fc, precision=jax.lax.Precision.HIGHEST) + fc_b[None, :]

    assert out.shape == (B, NUM_CLASSES)
    assert jnp.allclose(out, ref, atol=1e-2, rtol=1e-2), "Pallas output mismatch vs reference"

    print("KERNEL_OK")
</pallas_src>

<mosaic_0001>
module attributes {stable_mosaic.version = 11 : i64} {
  func.func @visualizer_kernel(%arg0: memref<2x1024xbf16, #tpu.memory_space<vmem>>, %arg1: memref<1024x128xbf16, #tpu.memory_space<vmem>>, %arg2: memref<128x128xf32, #tpu.memory_space<vmem>>, %arg3: memref<1x128xf32, #tpu.memory_space<vmem>>, %arg4: memref<2x128xf32, #tpu.memory_space<vmem>>) attributes {dimension_semantics = [], scalar_prefetch = 0 : i64, scratch_operands = 0 : i64, tpu.core_type = #tpu.core_type<tc>} {
    %c0 = arith.constant 0 : index
    %c0_0 = arith.constant 0 : index
    %0 = vector.load %arg0[%c0, %c0_0] : memref<2x1024xbf16, #tpu.memory_space<vmem>>, vector<2x1024xbf16>
    %c0_1 = arith.constant 0 : index
    %c0_2 = arith.constant 0 : index
    %1 = vector.load %arg1[%c0_1, %c0_2] : memref<1024x128xbf16, #tpu.memory_space<vmem>>, vector<1024x128xbf16>
    %cst = arith.constant dense<0.000000e+00> : vector<2x128xf32>
    %2 = tpu.matmul %0, %1, %cst {dimension_numbers = #tpu.dot_dimension_numbers<[1], [0], [0], [1], [0, 0, 1, 1], [], []>} : vector<2x1024xbf16>, vector<1024x128xbf16>, vector<2x128xf32> -> vector<2x128xf32>
    %cst_3 = arith.constant 0.000000e+00 : f32
    %3 = vector.broadcast %cst_3 : f32 to vector<2x128xf32>
    %4 = arith.maximumf %2, %3 : vector<2x128xf32>
    %c0_4 = arith.constant 0 : index
    %c0_5 = arith.constant 0 : index
    %5 = vector.load %arg2[%c0_4, %c0_5] : memref<128x128xf32, #tpu.memory_space<vmem>>, vector<128x128xf32>
    %cst_6 = arith.constant dense<0.000000e+00> : vector<2x128xf32>
    %6 = tpu.matmul %4, %5, %cst_6 {dimension_numbers = #tpu.dot_dimension_numbers<[1], [0], [0], [1], [0, 0, 1, 1], [], []>} : vector<2x128xf32>, vector<128x128xf32>, vector<2x128xf32> -> vector<2x128xf32>
    %c0_7 = arith.constant 0 : index
    %c0_8 = arith.constant 0 : index
    %7 = vector.load %arg3[%c0_7, %c0_8] : memref<1x128xf32, #tpu.memory_space<vmem>>, vector<1x128xf32>
    %8 = vector.broadcast %7 : vector<1x128xf32> to vector<2x128xf32>
    %9 = arith.addf %6, %8 : vector<2x128xf32>
    %c0_9 = arith.constant 0 : index
    %c0_10 = arith.constant 0 : index
    %10 = vector.load %arg4[%c0_9, %c0_10] : memref<2x128xf32, #tpu.memory_space<vmem>>, vector<2x128xf32>
    tpu.vector_store %arg4[%c0_9, %c0_10], %9 {strides = array<i32>} : memref<2x128xf32, #tpu.memory_space<vmem>>, vector<2x128xf32>,
    return
  }
}

</mosaic_0001>

<llo_original>
// kernel: visualizer_forward.1
$region0: #{visualizer_forward.1}
  #allocation0 [shape = 'u32[]', space=smem, size = 0x4, offset = 0x4, fixed_abs, tag = 'smem constant byte address 0x4 - core index']
  #allocation1 [shape = 'u32[144,128]{1,0:T(1,128)}', space=vmem, size = 0x12000, scoped, tag = 'internal scratch']
  %s0 = inlined_call_operand.vmem [shape: bf16[2,1024], index: 0, kind: input, shape index: {}]
  %s1 = inlined_call_operand.vmem [shape: bf16[1024,128], index: 1, kind: input, shape index: {}]
  %s2 = inlined_call_operand.vmem [shape: f32[128,128], index: 2, kind: input, shape index: {}]
  %s3 = inlined_call_operand.vmem [shape: f32[1,128], index: 3, kind: input, shape index: {}]
  %s4 = inlined_call_operand.hbm [shape: f32[2,128], index: 4, kind: output, shape index: {}]
  %s5 = sld [smem:[#allocation0]]
  $region26: #{visualizer_forward.1} parent=0
    _
  %s7 = ssub.s32 1, %s5
  %s8 = scalar_select 0, %s7, %s5
  $region1: #{visualizer_forward.1} parent=0
    #allocation2 [shape = 'u8[1024]{0}', space=vmem, size = 0x400, scoped, tag = 'output window, operand 0, single buffered']
    #allocation3 [shape = 's32[1]{0}', space=sflag, size = 0x4, scoped, tag = 'scoped memory for visualizer_forward.1']
    %9 = vsyncpa [#allocation3], 0
    // Predicated region
    $region2: #{visualizer_forward.1} parent=1 // pred_check
      _
    $region3: #{visualizer_forward.1} parent=1 // pred_check_branch
      %11 = sbr.rel (0) target = $region5
    $region4: #{visualizer_forward.1} parent=1 // pred_region
      _
    $region5: #{visualizer_forward.1} parent=1 // pred_fallthru
      _
    // Predicated region
    $region6: #{visualizer_forward.1} parent=1 // pred_check
      _
    $region7: #{visualizer_forward.1} parent=1 // pred_check_branch
      %13 = sbr.rel (0) target = $region9
    $region8: #{visualizer_forward.1} parent=1 // pred_region
      _
    $region9: #{visualizer_forward.1} parent=1 // pred_fallthru
      _
    // Predicated region
    $region10: #{visualizer_forward.1} parent=1 // pred_check
      _
    $region11: #{visualizer_forward.1} parent=1 // pred_check_branch
      %15 = sbr.rel (0) target = $region13
    $region12: #{visualizer_forward.1} parent=1 // pred_region
      _
    $region13: #{visualizer_forward.1} parent=1 // pred_fallthru
      _
    // Predicated region
    $region14: #{visualizer_forward.1} parent=1 // pred_check
      _
    $region15: #{visualizer_forward.1} parent=1 // pred_check_branch
      %17 = sbr.rel (0) target = $region17
    $region16: #{visualizer_forward.1} parent=1 // pred_region
      _
    $region17: #{visualizer_forward.1} parent=1 // pred_fallthru
      _
    %v19 = vld [vmem:[%s0] sm:$0xff]
    %v20 = vld [vmem:[%s1] sm:$0xf]
    %v21 = vld [vmem:[%s1 + $0x4] sm:$0xf]
    %v22 = vld [vmem:[%s1 + $0x8] sm:$0xf]
    %v23 = vld [vmem:[%s1 + $0xc] sm:$0xf]
    %v24 = vld [vmem:[%s1 + $0x10] sm:$0xf]
    %v25 = vld [vmem:[%s1 + $0x14] sm:$0xf]
    %v26 = vld [vmem:[%s1 + $0x18] sm:$0xf]
    %v27 = vld [vmem:[%s1 + $0x1c] sm:$0xf]
    %v28 = vld [vmem:[%s1 + $0x20] sm:$0xf]
    %v29 = vld [vmem:[%s1 + $0x24] sm:$0xf]
    %v30 = vld [vmem:[%s1 + $0x28] sm:$0xf]
    %v31 = vld [vmem:[%s1 + $0x2c] sm:$0xf]
    %v32 = vld [vmem:[%s1 + $0x30] sm:$0xf]
    %v33 = vld [vmem:[%s1 + $0x34] sm:$0xf]
    %v34 = vld [vmem:[%s1 + $0x38] sm:$0xf]
    %v35 = vld [vmem:[%s1 + $0x3c] sm:$0xf]
    %v36 = vld [vmem:[%s1 + $0x40] sm:$0xf]
    %v37 = vld [vmem:[%s1 + $0x44] sm:$0xf]
    %v38 = vld [vmem:[%s1 + $0x48] sm:$0xf]
    %v39 = vld [vmem:[%s1 + $0x4c] sm:$0xf]
    %v40 = vld [vmem:[%s1 + $0x50] sm:$0xf]
    %v41 = vld [vmem:[%s1 + $0x54] sm:$0xf]
    %v42 = vld [vmem:[%s1 + $0x58] sm:$0xf]
    %v43 = vld [vmem:[%s1 + $0x5c] sm:$0xf]
    %v44 = vld [vmem:[%s1 + $0x60] sm:$0xf]
    %v45 = vld [vmem:[%s1 + $0x64] sm:$0xf]
    %v46 = vld [vmem:[%s1 + $0x68] sm:$0xf]
    %v47 = vld [vmem:[%s1 + $0x6c] sm:$0xf]
    %v48 = vld [vmem:[%s1 + $0x70] sm:$0xf]
    %v49 = vld [vmem:[%s1 + $0x74] sm:$0xf]
    %v50 = vld [vmem:[%s1 + $0x78] sm:$0xf]
    %v51 = vld [vmem:[%s1 + $0x7c] sm:$0xf]
    %v52 = vld [vmem:[%s1 + $0x80] sm:$0xf]
    %v53 = vld [vmem:[%s1 + $0x84] sm:$0xf]
    %v54 = vld [vmem:[%s1 + $0x88] sm:$0xf]
    %v55 = vld [vmem:[%s1 + $0x8c] sm:$0xf]
    %v56 = vld [vmem:[%s1 + $0x90] sm:$0xf]
    %v57 = vld [vmem:[%s1 + $0x94] sm:$0xf]
    %v58 = vld [vmem:[%s1 + $0x98] sm:$0xf]
    %v59 = vld [vmem:[%s1 + $0x9c] sm:$0xf]
    %v60 = vld [vmem:[%s1 + $0xa0] sm:$0xf]
    %v61 = vld [vmem:[%s1 + $0xa4] sm:$0xf]
    %v62 = vld [vmem:[%s1 + $0xa8] sm:$0xf]
    %v63 = vld [vmem:[%s1 + $0xac] sm:$0xf]
    %v64 = vld [vmem:[%s1 + $0xb0] sm:$0xf]
    %v65 = vld [vmem:[%s1 + $0xb4] sm:$0xf]
    %v66 = vld [vmem:[%s1 + $0xb8] sm:$0xf]
    %v67 = vld [vmem:[%s1 + $0xbc] sm:$0xf]
    %v68 = vld [vmem:[%s1 + $0xc0] sm:$0xf]
    %v69 = vld [vmem:[%s1 + $0xc4] sm:$0xf]
    %v70 = vld [vmem:[%s1 + $0xc8] sm:$0xf]
    %v71 = vld [vmem:[%s1 + $0xcc] sm:$0xf]
    %v72 = vld [vmem:[%s1 + $0xd0] sm:$0xf]
    %v73 = vld [vmem:[%s1 + $0xd4] sm:$0xf]
    %v74 = vld [vmem:[%s1 + $0xd8] sm:$0xf]
    %v75 = vld [vmem:[%s1 + $0xdc] sm:$0xf]
    %v76 = vld [vmem:[%s1 + $0xe0] sm:$0xf]
    %v77 = vld [vmem:[%s1 + $0xe4] sm:$0xf]
    %v78 = vld [vmem:[%s1 + $0xe8] sm:$0xf]
    %v79 = vld [vmem:[%s1 + $0xec] sm:$0xf]
    %v80 = vld [vmem:[%s1 + $0xf0] sm:$0xf]
    %v81 = vld [vmem:[%s1 + $0xf4] sm:$0xf]
    %v82 = vld [vmem:[%s1 + $0xf8] sm:$0xf]
    %v83 = vld [vmem:[%s1 + $0xfc] sm:$0xf]
    %v84 = vld [vmem:[%s1 + $0x100] sm:$0xf]
    %v85 = vld [vmem:[%s1 + $0x104] sm:$0xf]
    %v86 = vld [vmem:[%s1 + $0x108] sm:$0xf]
    %v87 = vld [vmem:[%s1 + $0x10c] sm:$0xf]
    %v88 = vld [vmem:[%s1 + $0x110] sm:$0xf]
    %v89 = vld [vmem:[%s1 + $0x114] sm:$0xf]
    %v90 = vld [vmem:[%s1 + $0x118] sm:$0xf]
    %v91 = vld [vmem:[%s1 + $0x11c] sm:$0xf]
    %v92 = vld [vmem:[%s1 + $0x120] sm:$0xf]
    %v93 = vld [vmem:[%s1 + $0x124] sm:$0xf]
    %v94 = vld [vmem:[%s1 + $0x128] sm:$0xf]
    %v95 = vld [vmem:[%s1 + $0x12c] sm:$0xf]
    %v96 = vld [vmem:[%s1 + $0x130] sm:$0xf]
    %v97 = vld [vmem:[%s1 + $0x134] sm:$0xf]
    %v98 = vld [vmem:[%s1 + $0x138] sm:$0xf]
    %v99 = vld [vmem:[%s1 + $0x13c] sm:$0xf]
    %v100 = vld [vmem:[%s1 + $0x140] sm:$0xf]
    %v101 = vld [vmem:[%s1 + $0x144] sm:$0xf]
    %v102 = vld [vmem:[%s1 + $0x148] sm:$0xf]
    %v103 = vld [vmem:[%s1 + $0x14c] sm:$0xf]
    %v104 = vld [vmem:[%s1 + $0x150] sm:$0xf]
    %v105 = vld [vmem:[%s1 + $0x154] sm:$0xf]
    %v106 = vld [vmem:[%s1 + $0x158] sm:$0xf]
    %v107 = vld [vmem:[%s1 + $0x15c] sm:$0xf]
    %v108 = vld [vmem:[%s1 + $0x160] sm:$0xf]
    %v109 = vld [vmem:[%s1 + $0x164] sm:$0xf]
    %v110 = vld [vmem:[%s1 + $0x168] sm:$0xf]
    %v111 = vld [vmem:[%s1 + $0x16c] sm:$0xf]
    %v112 = vld [vmem:[%s1 + $0x170] sm:$0xf]
    %v113 = vld [vmem:[%s1 + $0x174] sm:$0xf]
    %v114 = vld [vmem:[%s1 + $0x178] sm:$0xf]
    %v115 = vld [vmem:[%s1 + $0x17c] sm:$0xf]
    %v116 = vld [vmem:[%s1 + $0x180] sm:$0xf]
    %v117 = vld [vmem:[%s1 + $0x184] sm:$0xf]
    %v118 = vld [vmem:[%s1 + $0x188] sm:$0xf]
    %v119 = vld [vmem:[%s1 + $0x18c] sm:$0xf]
    %v120 = vld [vmem:[%s1 + $0x190] sm:$0xf]
    %v121 = vld [vmem:[%s1 + $0x194] sm:$0xf]
    %v122 = vld [vmem:[%s1 + $0x198] sm:$0xf]
    %v123 = vld [vmem:[%s1 + $0x19c] sm:$0xf]
    %v124 = vld [vmem:[%s1 + $0x1a0] sm:$0xf]
    %v125 = vld [vmem:[%s1 + $0x1a4] sm:$0xf]
    %v126 = vld [vmem:[%s1 + $0x1a8] sm:$0xf]
    %v127 = vld [vmem:[%s1 + $0x1ac] sm:$0xf]
    %v128 = vld [vmem:[%s1 + $0x1b0] sm:$0xf]
    %v129 = vld [vmem:[%s1 + $0x1b4] sm:$0xf]
    %v130 = vld [vmem:[%s1 + $0x1b8] sm:$0xf]
    %v131 = vld [vmem:[%s1 + $0x1bc] sm:$0xf]
    %v132 = vld [vmem:[%s1 + $0x1c0] sm:$0xf]
    %v133 = vld [vmem:[%s1 + $0x1c4] sm:$0xf]
    %v134 = vld [vmem:[%s1 + $0x1c8] sm:$0xf]
    %v135 = vld [vmem:[%s1 + $0x1cc] sm:$0xf]
    %v136 = vld [vmem:[%s1 + $0x1d0] sm:$0xf]
    %v137 = vld [vmem:[%s1 + $0x1d4] sm:$0xf]
    %v138 = vld [vmem:[%s1 + $0x1d8] sm:$0xf]
    %v139 = vld [vmem:[%s1 + $0x1dc] sm:$0xf]
    %v140 = vld [vmem:[%s1 + $0x1e0] sm:$0xf]
    %v141 = vld [vmem:[%s1 + $0x1e4] sm:$0xf]
    %v142 = vld [vmem:[%s1 + $0x1e8] sm:$0xf]
    %v143 = vld [vmem:[%s1 + $0x1ec] sm:$0xf]
    %v144 = vld [vmem:[%s1 + $0x1f0] sm:$0xf]
    %v145 = vld [vmem:[%s1 + $0x1f4] sm:$0xf]
    %v146 = vld [vmem:[%s1 + $0x1f8] sm:$0xf]
    %v147 = vld [vmem:[%s1 + $0x1fc] sm:$0xf]
    %v149 = vcombine.high %v19, %v19
    %v151 = vunpack.c.l.s4 1966171168
    %v152 = vunpack.c.0.s8 %v151
    %v153 = vlaneseq
    %v154 = vshrl.u32 %v153, 7
    %v155 = vsub.s32 %v152, %v154
    %v156 = vrot.slane %v19, %v155
    %v158 = vunpack.c.l.s4 1966171168
    %v159 = vunpack.c.0.s8 %v158
    %v160 = vlaneseq
    %v161 = vshrl.u32 %v160, 7
    %v162 = vsub.s32 %v159, %v161
    %v163 = vrot.slane %v149, %v162
    %v164 = vcombine.high %v156, %v156
    %v165 = vcombine.high %v163, %v163
    %v167 = vunpack.c.l.s4 1966171168
    %v168 = vunpack.c.0.s8 %v167
    %v169 = vlaneseq
    %v170 = vshrl.u32 %v169, 7
    %v171 = vsub.s32 %v168, %v170
    %v172 = vrot.slane %v156, %v171
    %v174 = vunpack.c.l.s4 1966171168
    %v175 = vunpack.c.0.s8 %v174
    %v176 = vlaneseq
    %v177 = vshrl.u32 %v176, 7
    %v178 = vsub.s32 %v175, %v177
    %v179 = vrot.slane %v163, %v178
    %v181 = vunpack.c.l.s4 1966171168
    %v182 = vunpack.c.0.s8 %v181
    %v183 = vlaneseq
    %v184 = vshrl.u32 %v183, 7
    %v185 = vsub.s32 %v182, %v184
    %v186 = vrot.slane %v164, %v185
    %v188 = vunpack.c.l.s4 1966171168
    %v189 = vunpack.c.0.s8 %v188
    %v190 = vlaneseq
    %v191 = vshrl.u32 %v190, 7
    %v192 = vsub.s32 %v189, %v191
    %v193 = vrot.slane %v165, %v192
    %v194 = vcombine.high %v172, %v172
    %v195 = vcombine.high %v179, %v179
    %v196 = vcombine.high %v186, %v186
    %v197 = vcombine.high %v193, %v193
    %v334 = vunpack.c.l.b16 %v20
    %v335 = vunpack.c.l.b16 %v21
    %v336 = vunpack.c.l.b16 %v22
    %v337 = vunpack.c.l.b16 %v23
    %v338 = vunpack.c.l.b16 %v24
    %v339 = vunpack.c.l.b16 %v25
    %v340 = vunpack.c.l.b16 %v26
    %v341 = vunpack.c.l.b16 %v27
    %v342 = vunpack.c.l.b16 %v28
    %v343 = vunpack.c.l.b16 %v29
    %v344 = vunpack.c.l.b16 %v30
    %v345 = vunpack.c.l.b16 %v31
    %v346 = vunpack.c.l.b16 %v32
    %v347 = vunpack.c.l.b16 %v33
    %v348 = vunpack.c.l.b16 %v34
    %v349 = vunpack.c.l.b16 %v35
    %v350 = vunpack.c.l.b16 %v36
    %v351 = vunpack.c.l.b16 %v37
    %v352 = vunpack.c.l.b16 %v38
    %v353 = vunpack.c.l.b16 %v39
    %v354 = vunpack.c.l.b16 %v40
    %v355 = vunpack.c.l.b16 %v41
    %v356 = vunpack.c.l.b16 %v42
    %v357 = vunpack.c.l.b16 %v43
    %v358 = vunpack.c.l.b16 %v44
    %v359 = vunpack.c.l.b16 %v45
    %v360 = vunpack.c.l.b16 %v46
    %v361 = vunpack.c.l.b16 %v47
    %v362 = vunpack.c.l.b16 %v48
    %v363 = vunpack.c.l.b16 %v49
    %v364 = vunpack.c.l.b16 %v50
    %v365 = vunpack.c.l.b16 %v51
    %v366 = vunpack.c.l.b16 %v52
    %v367 = vunpack.c.l.b16 %v53
    %v368 = vunpack.c.l.b16 %v54
    %v369 = vunpack.c.l.b16 %v55
    %v370 = vunpack.c.l.b16 %v56
    %v371 = vunpack.c.l.b16 %v57
    %v372 = vunpack.c.l.b16 %v58
    %v373 = vunpack.c.l.b16 %v59
    %v374 = vunpack.c.l.b16 %v60
    %v375 = vunpack.c.l.b16 %v61
    %v376 = vunpack.c.l.b16 %v62
    %v377 = vunpack.c.l.b16 %v63
    %v378 = vunpack.c.l.b16 %v64
    %v379 = vunpack.c.l.b16 %v65
    %v380 = vunpack.c.l.b16 %v66
    %v381 = vunpack.c.l.b16 %v67
    %v382 = vunpack.c.l.b16 %v68
    %v383 = vunpack.c.l.b16 %v69
    %v384 = vunpack.c.l.b16 %v70
    %v385 = vunpack.c.l.b16 %v71
    %v386 = vunpack.c.l.b16 %v72
    %v387 = vunpack.c.l.b16 %v73
    %v388 = vunpack.c.l.b16 %v74
    %v389 = vunpack.c.l.b16 %v75
    %v390 = vunpack.c.l.b16 %v76
    %v391 = vunpack.c.l.b16 %v77
    %v392 = vunpack.c.l.b16 %v78
    %v393 = vunpack.c.l.b16 %v79
    %v394 = vunpack.c.l.b16 %v80
    %v395 = vunpack.c.l.b16 %v81
    %v396 = vunpack.c.l.b16 %v82
    %v397 = vunpack.c.l.b16 %v83
    %v398 = vunpack.c.l.b16 %v84
    %v399 = vunpack.c.l.b16 %v85
    %v400 = vunpack.c.l.b16 %v86
    %v401 = vunpack.c.l.b16 %v87
    %v402 = vunpack.c.l.b16 %v88
    %v403 = vunpack.c.l.b16 %v89
    %v404 = vunpack.c.l.b16 %v90
    %v405 = vunpack.c.l.b16 %v91
    %v406 = vunpack.c.l.b16 %v92
    %v407 = vunpack.c.l.b16 %v93
    %v408 = vunpack.c.l.b16 %v94
    %v409 = vunpack.c.l.b16 %v95
    %v410 = vunpack.c.l.b16 %v96
    %v411 = vunpack.c.l.b16 %v97
    %v412 = vunpack.c.l.b16 %v98
    %v413 = vunpack.c.l.b16 %v99
    %v414 = vunpack.c.l.b16 %v100
    %v415 = vunpack.c.l.b16 %v101
    %v416 = vunpack.c.l.b16 %v102
    %v417 = vunpack.c.l.b16 %v103
    %v418 = vunpack.c.l.b16 %v104
    %v419 = vunpack.c.l.b16 %v105
    %v420 = vunpack.c.l.b16 %v106
    %v421 = vunpack.c.l.b16 %v107
    %v422 = vunpack.c.l.b16 %v108
    %v423 = vunpack.c.l.b16 %v109
    %v424 = vunpack.c.l.b16 %v110
    %v425 = vunpack.c.l.b16 %v111
    %v426 = vunpack.c.l.b16 %v112
    %v427 = vunpack.c.l.b16 %v113
    %v428 = vunpack.c.l.b16 %v114
    %v429 = vunpack.c.l.b16 %v115
    %v430 = vunpack.c.l.b16 %v116
    %v431 = vunpack.c.l.b16 %v117
    %v432 = vunpack.c.l.b16 %v118
    %v433 = vunpack.c.l.b16 %v119
    %v434 = vunpack.c.l.b16 %v120
    %v435 = vunpack.c.l.b16 %v121
    %v436 = vunpack.c.l.b16 %v122
    %v437 = vunpack.c.l.b16 %v123
    %v438 = vunpack.c.l.b16 %v124
    %v439 = vunpack.c.l.b16 %v125
    %v440 = vunpack.c.l.b16 %v126
    %v441 = vunpack.c.l.b16 %v127
    %v442 = vunpack.c.l.b16 %v128
    %v443 = vunpack.c.l.b16 %v129
    %v444 = vunpack.c.l.b16 %v130
    %v445 = vunpack.c.l.b16 %v131
    %v446 = vunpack.c.l.b16 %v132
    %v447 = vunpack.c.l.b16 %v133
    %v448 = vunpack.c.l.b16 %v134
    %v449 = vunpack.c.l.b16 %v135
    %v450 = vunpack.c.l.b16 %v136
    %v451 = vunpack.c.l.b16 %v137
    %v452 = vunpack.c.l.b16 %v138
    %v453 = vunpack.c.l.b16 %v139
    %v454 = vunpack.c.l.b16 %v140
    %v455 = vunpack.c.l.b16 %v141
    %v456 = vunpack.c.l.b16 %v142
    %v457 = vunpack.c.l.b16 %v143
    %v458 = vunpack.c.l.b16 %v144
    %v459 = vunpack.c.l.b16 %v145
    %v460 = vunpack.c.l.b16 %v146
    %v461 = vunpack.c.l.b16 %v147
    %v462 = vpack.c.b16 %v335, %v334
    %v463 = vpack.c.b16 %v337, %v336
    %v464 = vpack.c.b16 %v339, %v338
    %v465 = vpack.c.b16 %v341, %v340
    %v466 = vpack.c.b16 %v343, %v342
    %v467 = vpack.c.b16 %v345, %v344
    %v468 = vpack.c.b16 %v347, %v346
    %v469 = vpack.c.b16 %v349, %v348
    %v470 = vpack.c.b16 %v351, %v350
    %v471 = vpack.c.b16 %v353, %v352
    %v472 = vpack.c.b16 %v355, %v354
    %v473 = vpack.c.b16 %v357, %v356
    %v474 = vpack.c.b16 %v359, %v358
    %v475 = vpack.c.b16 %v361, %v360
    %v476 = vpack.c.b16 %v363, %v362
    %v477 = vpack.c.b16 %v365, %v364
    %v478 = vpack.c.b16 %v367, %v366
    %v479 = vpack.c.b16 %v369, %v368
    %v480 = vpack.c.b16 %v371, %v370
    %v481 = vpack.c.b16 %v373, %v372
    %v482 = vpack.c.b16 %v375, %v374
    %v483 = vpack.c.b16 %v377, %v376
    %v484 = vpack.c.b16 %v379, %v378
    %v485 = vpack.c.b16 %v381, %v380
    %v486 = vpack.c.b16 %v383, %v382
    %v487 = vpack.c.b16 %v385, %v384
    %v488 = vpack.c.b16 %v387, %v386
    %v489 = vpack.c.b16 %v389, %v388
    %v490 = vpack.c.b16 %v391, %v390
    %v491 = vpack.c.b16 %v393, %v392
    %v492 = vpack.c.b16 %v395, %v394
    %v493 = vpack.c.b16 %v397, %v396
    %v494 = vpack.c.b16 %v399, %v398
    %v495 = vpack.c.b16 %v401, %v400
    %v496 = vpack.c.b16 %v403, %v402
    %v497 = vpack.c.b16 %v405, %v404
    %v498 = vpack.c.b16 %v407, %v406
    %v499 = vpack.c.b16 %v409, %v408
    %v500 = vpack.c.b16 %v411, %v410
    %v501 = vpack.c.b16 %v413, %v412
    %v502 = vpack.c.b16 %v415, %v414
    %v503 = vpack.c.b16 %v417, %v416
    %v504 = vpack.c.b16 %v419, %v418
    %v505 = vpack.c.b16 %v421, %v420
    %v506 = vpack.c.b16 %v423, %v422
    %v507 = vpack.c.b16 %v425, %v424
    %v508 = vpack.c.b16 %v427, %v426
    %v509 = vpack.c.b16 %v429, %v428
    %v510 = vpack.c.b16 %v431, %v430
    %v511 = vpack.c.b16 %v433, %v432
    %v512 = vpack.c.b16 %v435, %v434
    %v513 = vpack.c.b16 %v437, %v436
    %v514 = vpack.c.b16 %v439, %v438
    %v515 = vpack.c.b16 %v441, %v440
    %v516 = vpack.c.b16 %v443, %v442
    %v517 = vpack.c.b16 %v445, %v444
    %v518 = vpack.c.b16 %v447, %v446
    %v519 = vpack.c.b16 %v449, %v448
    %v520 = vpack.c.b16 %v451, %v450
    %v521 = vpack.c.b16 %v453, %v452
    %v522 = vpack.c.b16 %v455, %v454
    %v523 = vpack.c.b16 %v457, %v456
    %v524 = vpack.c.b16 %v459, %v458
    %v525 = vpack.c.b16 %v461, %v460
    %590 = vmatprep.subr.bf16.mxu0 0
    %591 = vmatpush1.bf16.msra.mxu0 %v469
    %592 = vmatprep.subr.bf16.mxu0 0
    %593 = vmatpush1.bf16.msra.mxu0 %v468
    %594 = vmatprep.subr.bf16.mxu0 0
    %595 = vmatpush1.bf16.msra.mxu0 %v467
    %596 = vmatprep.subr.bf16.mxu0 0
    %597 = vmatpush1.bf16.msra.mxu0 %v466
    %598 = vmatprep.subr.bf16.mxu0 0
    %599 = vmatpush1.bf16.msra.mxu0 %v465
    %600 = vmatprep.subr.bf16.mxu0 0
    %601 = vmatpush1.bf16.msra.mxu0 %v464
    %602 = vmatprep.subr.bf16.mxu0 0
    %603 = vmatpush1.bf16.msra.mxu0 %v463
    %604 = vmatprep.subr.bf16.mxu0 0
    %605 = vmatpush1.bf16.msra.mxu0 %v462
    %606 = vmatprep.subr.bf16.mxu0 0
    %607 = vmatpush2.bf16.msra.mxu0 %v477
    %608 = vmatprep.subr.bf16.mxu0 0
    %609 = vmatpush2.bf16.msra.mxu0 %v476
    %610 = vmatprep.subr.bf16.mxu0 0
    %611 = vmatpush2.bf16.msra.mxu0 %v475
    %612 = vmatprep.subr.bf16.mxu0 0
    %613 = vmatpush2.bf16.msra.mxu0 %v474
    %614 = vmatprep.subr.bf16.mxu0 0
    %615 = vmatpush2.bf16.msra.mxu0 %v473
    %616 = vmatprep.subr.bf16.mxu0 0
    %617 = vmatpush2.bf16.msra.mxu0 %v472
    %618 = vmatprep.subr.bf16.mxu0 0
    %619 = vmatpush2.bf16.msra.mxu0 %v471
    %620 = vmatprep.subr.bf16.mxu0 0
    %621 = vmatpush2.bf16.msra.mxu0 %v470
    %622 = vmatprep.mubr.bf16.mxu0 %v186
    %623 = vmatmul.mubr.bf16.gmra.mxu0 %v172
    %v624 = vpop.f32.mrf.mxu0
    %v625 = vadd.f32 0.0, %v624
    %v626 = vpop.f32.mrf.mxu0
    %v627 = vpop.f32.mrf.mxu0
    %v628 = vpop.f32.mrf.mxu0
    %629 = vdwg.mxu0
    %630 = vmatprep.subr.bf16.mxu0 0
    %631 = vmatpush1.bf16.msra.mxu0 %v485
    %632 = vmatprep.subr.bf16.mxu0 0
    %633 = vmatpush1.bf16.msra.mxu0 %v484
    %634 = vmatprep.subr.bf16.mxu0 0
    %635 = vmatpush1.bf16.msra.mxu0 %v483
    %636 = vmatprep.subr.bf16.mxu0 0
    %637 = vmatpush1.bf16.msra.mxu0 %v482
    %638 = vmatprep.subr.bf16.mxu0 0
    %639 = vmatpush1.bf16.msra.mxu0 %v481
    %640 = vmatprep.subr.bf16.mxu0 0
    %641 = vmatpush1.bf16.msra.mxu0 %v480
    %642 = vmatprep.subr.bf16.mxu0 0
    %643 = vmatpush1.bf16.msra.mxu0 %v479
    %644 = vmatprep.subr.bf16.mxu0 0
    %645 = vmatpush1.bf16.msra.mxu0 %v478
    %646 = vmatprep.subr.bf16.mxu0 0
    %647 = vmatpush2.bf16.msra.mxu0 %v493
    %648 = vmatprep.subr.bf16.mxu0 0
    %649 = vmatpush2.bf16.msra.mxu0 %v492
    %650 = vmatprep.subr.bf16.mxu0 0
    %651 = vmatpush2.bf16.msra.mxu0 %v491
    %652 = vmatprep.subr.bf16.mxu0 0
    %653 = vmatpush2.bf16.msra.mxu0 %v490
    %654 = vmatprep.subr.bf16.mxu0 0
    %655 = vmatpush2.bf16.msra.mxu0 %v489
    %656 = vmatprep.subr.bf16.mxu0 0
    %657 = vmatpush2.bf16.msra.mxu0 %v488
    %658 = vmatprep.subr.bf16.mxu0 0
    %659 = vmatpush2.bf16.msra.mxu0 %v487
    %660 = vmatprep.subr.bf16.mxu0 0
    %661 = vmatpush2.bf16.msra.mxu0 %v486
    %662 = vmatprep.mubr.bf16.mxu0 %v196
    %663 = vmatmul.mubr.bf16.gmra.mxu0 %v194
    %v664 = vpop.f32.mrf.mxu0
    %v665 = vadd.f32 %v625, %v664
    %v666 = vpop.f32.mrf.mxu0
    %v667 = vpop.f32.mrf.mxu0
    %v668 = vpop.f32.mrf.mxu0
    %669 = vdwg.mxu0
    %670 = vmatprep.subr.bf16.mxu0 0
    %671 = vmatpush1.bf16.msra.mxu0 %v501
    %672 = vmatprep.subr.bf16.mxu0 0
    %673 = vmatpush1.bf16.msra.mxu0 %v500
    %674 = vmatprep.subr.bf16.mxu0 0
    %675 = vmatpush1.bf16.msra.mxu0 %v499
    %676 = vmatprep.subr.bf16.mxu0 0
    %677 = vmatpush1.bf16.msra.mxu0 %v498
    %678 = vmatprep.subr.bf16.mxu0 0
    %679 = vmatpush1.bf16.msra.mxu0 %v497
    %680 = vmatprep.subr.bf16.mxu0 0
    %681 = vmatpush1.bf16.msra.mxu0 %v496
    %682 = vmatprep.subr.bf16.mxu0 0
    %683 = vmatpush1.bf16.msra.mxu0 %v495
    %684 = vmatprep.subr.bf16.mxu0 0
    %685 = vmatpush1.bf16.msra.mxu0 %v494
    %686 = vmatprep.subr.bf16.mxu0 0
    %687 = vmatpush2.bf16.msra.mxu0 %v509
    %688 = vmatprep.subr.bf16.mxu0 0
    %689 = vmatpush2.bf16.msra.mxu0 %v508
    %690 = vmatprep.subr.bf16.mxu0 0
    %691 = vmatpush2.bf16.msra.mxu0 %v507
    %692 = vmatprep.subr.bf16.mxu0 0
    %693 = vmatpush2.bf16.msra.mxu0 %v506
    %694 = vmatprep.subr.bf16.mxu0 0
    %695 = vmatpush2.bf16.msra.mxu0 %v505
    %696 = vmatprep.subr.bf16.mxu0 0
    %697 = vmatpush2.bf16.msra.mxu0 %v504
    %698 = vmatprep.subr.bf16.mxu0 0
    %699 = vmatpush2.bf16.msra.mxu0 %v503
    %700 = vmatprep.subr.bf16.mxu0 0
    %701 = vmatpush2.bf16.msra.mxu0 %v502
    %702 = vmatprep.mubr.bf16.mxu0 %v193
    %703 = vmatmul.mubr.bf16.gmra.mxu0 %v179
    %v704 = vpop.f32.mrf.mxu0
    %v705 = vadd.f32 %v665, %v704
    %v706 = vpop.f32.mrf.mxu0
    %v707 = vpop.f32.mrf.mxu0
    %v708 = vpop.f32.mrf.mxu0
    %709 = vdwg.mxu0
    %710 = vmatprep.subr.bf16.mxu0 0
    %711 = vmatpush1.bf16.msra.mxu0 %v517
    %712 = vmatprep.subr.bf16.mxu0 0
    %713 = vmatpush1.bf16.msra.mxu0 %v516
    %714 = vmatprep.subr.bf16.mxu0 0
    %715 = vmatpush1.bf16.msra.mxu0 %v515
    %716 = vmatprep.subr.bf16.mxu0 0
    %717 = vmatpush1.bf16.msra.mxu0 %v514
    %718 = vmatprep.subr.bf16.mxu0 0
    %719 = vmatpush1.bf16.msra.mxu0 %v513
    %720 = vmatprep.subr.bf16.mxu0 0
    %721 = vmatpush1.bf16.msra.mxu0 %v512
    %722 = vmatprep.subr.bf16.mxu0 0
    %723 = vmatpush1.bf16.msra.mxu0 %v511
    %724 = vmatprep.subr.bf16.mxu0 0
    %725 = vmatpush1.bf16.msra.mxu0 %v510
    %726 = vmatprep.subr.bf16.mxu0 0
    %727 = vmatpush2.bf16.msra.mxu0 %v525
    %728 = vmatprep.subr.bf16.mxu0 0
    %729 = vmatpush2.bf16.msra.mxu0 %v524
    %730 = vmatprep.subr.bf16.mxu0 0
    %731 = vmatpush2.bf16.msra.mxu0 %v523
    %732 = vmatprep.subr.bf16.mxu0 0
    %733 = vmatpush2.bf16.msra.mxu0 %v522
    %734 = vmatprep.subr.bf16.mxu0 0
    %735 = vmatpush2.bf16.msra.mxu0 %v521
    %736 = vmatprep.subr.bf16.mxu0 0
    %737 = vmatpush2.bf16.msra.mxu0 %v520
    %738 = vmatprep.subr.bf16.mxu0 0
    %739 = vmatpush2.bf16.msra.mxu0 %v519
    %740 = vmatprep.subr.bf16.mxu0 0
    %741 = vmatpush2.bf16.msra.mxu0 %v518
    %742 = vmatprep.mubr.bf16.mxu0 %v197
    %743 = vmatmul.mubr.bf16.gmra.mxu0 %v195
    %v744 = vpop.f32.mrf.mxu0
    %v745 = vadd.f32 %v705, %v744
    %v746 = vpop.f32.mrf.mxu0
    %v747 = vpop.f32.mrf.mxu0
    %v748 = vpop.f32.mrf.mxu0
    %749 = vdwg.mxu0
    %v750 = vmax.f32 %v745, 0.0
    %v751 = vld [vmem:[%s2] sm:$0xff]
    %v752 = vld [vmem:[%s2 + $0x8] sm:$0xff]
    %v753 = vld [vmem:[%s2 + $0x10] sm:$0xff]
    %v754 = vld [vmem:[%s2 + $0x18] sm:$0xff]
    %v755 = vld [vmem:[%s2 + $0x20] sm:$0xff]
    %v756 = vld [vmem:[%s2 + $0x28] sm:$0xff]
    %v757 = vld [vmem:[%s2 + $0x30] sm:$0xff]
    %v758 = vld [vmem:[%s2 + $0x38] sm:$0xff]
    %v759 = vld [vmem:[%s2 + $0x40] sm:$0xff]
    %v760 = vld [vmem:[%s2 + $0x48] sm:$0xff]
    %v761 = vld [vmem:[%s2 + $0x50] sm:$0xff]
    %v762 = vld [vmem:[%s2 + $0x58] sm:$0xff]
    %v763 = vld [vmem:[%s2 + $0x60] sm:$0xff]
    %v764 = vld [vmem:[%s2 + $0x68] sm:$0xff]
    %v765 = vld [vmem:[%s2 + $0x70] sm:$0xff]
    %v766 = vld [vmem:[%s2 + $0x78] sm:$0xff]
    %v767 = vld [vmem:[%s3] sm:$0x1]
    %v769 = vlaneseq
    %v770 = vshrl.u32 %v769, 7
    %v771 = vsub.s32 0, %v770
    %v772 = vrot.slane %v767, %v771
    %774 = vmatprep.subr.mxu0 0.0
    %775 = vmatpush1.msra.mxu0 %v766
    %776 = vmatprep.subr.mxu0 0.0
    %777 = vmatpush1.msra.mxu0 %v765
    %778 = vmatprep.subr.mxu0 0.0
    %779 = vmatpush1.msra.mxu0 %v764
    %780 = vmatprep.subr.mxu0 0.0
    %781 = vmatpush1.msra.mxu0 %v763
    %782 = vmatprep.subr.mxu0 0.0
    %783 = vmatpush1.msra.mxu0 %v762
    %784 = vmatprep.subr.mxu0 0.0
    %785 = vmatpush1.msra.mxu0 %v761
    %786 = vmatprep.subr.mxu0 0.0
    %787 = vmatpush1.msra.mxu0 %v760
    %788 = vmatprep.subr.mxu0 0.0
    %789 = vmatpush1.msra.mxu0 %v759
    %790 = vmatprep.subr.mxu0 0.0
    %791 = vmatpush1.msra.mxu0 %v758
    %792 = vmatprep.subr.mxu0 0.0
    %793 = vmatpush1.msra.mxu0 %v757
    %794 = vmatprep.subr.mxu0 0.0
    %795 = vmatpush1.msra.mxu0 %v756
    %796 = vmatprep.subr.mxu0 0.0
    %797 = vmatpush1.msra.mxu0 %v755
    %798 = vmatprep.subr.mxu0 0.0
    %799 = vmatpush1.msra.mxu0 %v754
    %800 = vmatprep.subr.mxu0 0.0
    %801 = vmatpush1.msra.mxu0 %v753
    %802 = vmatprep.subr.mxu0 0.0
    %803 = vmatpush1.msra.mxu0 %v752
    %804 = vmatprep.subr.mxu0 0.0
    %805 = vmatpush1.msra.mxu0 %v751
    %806 = vmatprep.subr.mxu0 0.0
    %807 = vmatpush2.msra.mxu0 0.0
    %808 = vmatprep.subr.mxu0 0.0
    %809 = vmatpush2.msra.mxu0 0.0
    %810 = vmatprep.subr.mxu0 0.0
    %811 = vmatpush2.msra.mxu0 0.0
    %812 = vmatprep.subr.mxu0 0.0
    %813 = vmatpush2.msra.mxu0 0.0
    %814 = vmatprep.subr.mxu0 0.0
    %815 = vmatpush2.msra.mxu0 0.0
    %816 = vmatprep.subr.mxu0 0.0
    %817 = vmatpush2.msra.mxu0 0.0
    %818 = vmatprep.subr.mxu0 0.0
    %819 = vmatpush2.msra.mxu0 0.0
    %820 = vmatprep.subr.mxu0 0.0
    %821 = vmatpush2.msra.mxu0 0.0
    %822 = vmatprep.subr.mxu0 0.0
    %823 = vmatpush2.msra.mxu0 0.0
    %824 = vmatprep.subr.mxu0 0.0
    %825 = vmatpush2.msra.mxu0 0.0
    %826 = vmatprep.subr.mxu0 0.0
    %827 = vmatpush2.msra.mxu0 0.0
    %828 = vmatprep.subr.mxu0 0.0
    %829 = vmatpush2.msra.mxu0 0.0
    %830 = vmatprep.subr.mxu0 0.0
    %831 = vmatpush2.msra.mxu0 0.0
    %832 = vmatprep.subr.mxu0 0.0
    %833 = vmatpush2.msra.mxu0 0.0
    %834 = vmatprep.subr.mxu0 0.0
    %835 = vmatpush2.msra.mxu0 0.0
    %836 = vmatprep.subr.mxu0 0.0
    %837 = vmatpush2.msra.mxu0 0.0
    %838 = vmatprep.mubr.f32.mxu0 0.0
    %839 = vmatmul.mubr.f32.gmra.mxu0 %v750
    %v840 = vpop.f32.mrf.mxu0
    %v841 = vadd.f32 %v772, %v840
    %v842 = vpop.f32.mrf.mxu0
    %843 = vdwg.mxu0
    %844 = vst [vmem:[#allocation2] sm:$0x3] %v841
    // Predicated region
    $region18: #{visualizer_forward.1} parent=1 // pred_check
      _
    $region19: #{visualizer_forward.1} parent=1 // pred_check_branch
      %846 = sbr.rel (0) target = $region21
    $region20: #{visualizer_forward.1} parent=1 // pred_region
      %s848 = ssub.s32 32, 32
      %849 = vsyncadd [#allocation3], %s848
      %s851 = sshll.u32 [#allocation2], 4
      %s852 = int_to_ptr.vmem [resolvable:$true] %s851
      %854 = dma.vmem_to_hbm [thread:$0]  %s852, 32, %s4, [#allocation3]
    $region21: #{visualizer_forward.1} parent=1 // pred_fallthru
      _
    // Predicated region
    $region22: #{visualizer_forward.1} parent=1 // pred_check
      _
    $region23: #{visualizer_forward.1} parent=1 // pred_check_branch
      %856 = sbr.rel (0) target = $region25
    $region24: #{visualizer_forward.1} parent=1 // pred_region
      %857 = dma.done [#allocation3], 32
    $region25: #{visualizer_forward.1} parent=1 // pred_fallthru
      _
    %858 = vsyncpa [#allocation3], 1

</llo_original>
